<compile_context>
chip_gen: v7x
topology: tpu7x:2x2x1
jax: 0.10.0
libtpu: 0.0.40
codegen_flags: <defaults>
</compile_context>

<pallas_src>
import jax
import jax.numpy as jnp
from jax import lax
from jax.experimental import pallas as pl
from jax.experimental.pallas import tpu as pltpu

C_IN = 5
C_H = 10
C_OUT = 2

L_TILE_MAX = 32768   # lanes per grid step (I/O double buffers ~4 MiB f32)
LANE_CHUNK = 2048    # lanes per in-kernel compute chunk (intermediates ~128 KiB)


def _round_up(x, m):
    return ((x + m - 1) // m) * m


def _make_kernel(l_tile, chunk, use_bf16):
    """Build the fused 4-layer conv1x1 + tanh + softmax kernel for a lane tiling."""
    n_full = l_tile // chunk
    rem = l_tile - n_full * chunk
    act_dtype = jnp.bfloat16 if use_bf16 else jnp.float32

    def kernel(x_ref, w1_ref, w2_ref, w3_ref, w4_ref, b_ref, o_ref):
        # Weights are tiny and resident in VMEM (constant index_map -> no re-DMA).
        w1 = w1_ref[...]
        w2 = w2_ref[...].astype(act_dtype)
        w3 = w3_ref[...].astype(act_dtype)
        w4 = w4_ref[...].astype(act_dtype)
        # Packed biases: column j of the (C_H, 4) block is layer j+1's bias
        # (layer 4 uses only the first C_OUT rows of column 3).
        b1 = b_ref[:, 0:1]
        b2 = b_ref[:, 1:2]
        b3 = b_ref[:, 2:3]
        b4 = b_ref[0:C_OUT, 3:4]

        def compute(x, b1b, b2b, b3b, b4b):
            # x: (C_IN, w) -> softmax probs (C_OUT, w). L stays on lanes, so all
            # activations are per-lane; the dots contract over channels (MXU).
            h = jnp.dot(w1, x, preferred_element_type=jnp.float32) + b1b
            h = jnp.tanh(h.astype(act_dtype))
            h = jnp.dot(w2, h, preferred_element_type=jnp.float32) + b2b
            h = jnp.tanh(h.astype(act_dtype))
            h = jnp.dot(w3, h, preferred_element_type=jnp.float32) + b3b
            h = jnp.tanh(h.astype(act_dtype))
            logits = jnp.dot(w4, h, preferred_element_type=jnp.float32) + b4b
            # 2-way softmax over channels: no cross-sublane reduction, and the
            # exp argument is always <= 0 (overflow-free "stable sigmoid").
            d = logits[0:1, :] - logits[1:2, :]
            z = jnp.exp(-jnp.abs(d))
            p_big = 1.0 / (1.0 + z)   # exact recip: VALU has slack, EUP binds
            p0 = jnp.where(d >= 0.0, p_big, 1.0 - p_big)
            return jnp.concatenate([p0, 1.0 - p0], axis=0)   # one fused store

        def bcast(w):
            # Hoisted lane-broadcasts of the biases (not re-emitted per chunk).
            return (jnp.broadcast_to(b1, (C_H, w)),
                    jnp.broadcast_to(b2, (C_H, w)),
                    jnp.broadcast_to(b3, (C_H, w)),
                    jnp.broadcast_to(b4, (C_OUT, w)))

        if n_full > 0:
            bb = bcast(chunk)

            def body(c, carry):
                off = pl.multiple_of(c * chunk, chunk)
                x = x_ref[0, :, pl.ds(off, chunk)]
                o_ref[0, :, pl.ds(off, chunk)] = compute(x, *bb)
                return carry

            lax.fori_loop(0, n_full, body, 0, unroll=True)

        if rem > 0:
            off = n_full * chunk
            x = x_ref[0, :, pl.ds(off, rem)]
            o_ref[0, :, pl.ds(off, rem)] = compute(x, *bcast(rem))

    return kernel


def net_forward(x_ncl, params, *, use_bf16_activations=False, l_tile_max=L_TILE_MAX):
    """x_ncl: (N, 5, L) f32 -> (N, 2, L) f32 (softmax over the channel dim)."""
    w1, b1, w2, b2, w3, b3, w4, b4 = params
    N, C, L = x_ncl.shape
    assert C == C_IN

    # Lane-dense tiling directly in NCL (L on the lane axis). No pad / slice:
    # the grid uses cdiv and Pallas masks the ragged last block.
    l_tile = min(l_tile_max, _round_up(L, 128))
    chunk = min(LANE_CHUNK, l_tile)
    grid = (N, pl.cdiv(L, l_tile))

    # Pack the 4 biases into one (C_H, 4) block: column j = bias of layer j+1.
    b_packed = jnp.zeros((C_H, 4), jnp.float32)
    b_packed = b_packed.at[:, 0].set(b1[:, 0])
    b_packed = b_packed.at[:, 1].set(b2[:, 0])
    b_packed = b_packed.at[:, 2].set(b3[:, 0])
    b_packed = b_packed.at[:C_OUT, 3].set(b4[:, 0])

    def x_map(n, l):
        return (n, 0, l)

    def const_map(n, l):
        return (0, 0)

    kernel = _make_kernel(l_tile, chunk, use_bf16_activations)

    return pl.pallas_call(
        kernel,
        out_shape=jax.ShapeDtypeStruct((N, C_OUT, L), jnp.float32),
        grid_spec=pltpu.PrefetchScalarGridSpec(
            num_scalar_prefetch=0,
            grid=grid,
            in_specs=[
                pl.BlockSpec((1, C_IN, l_tile), x_map),
                pl.BlockSpec((C_H, C_IN), const_map),    # w1 (block == full array)
                pl.BlockSpec((C_H, C_H), const_map),     # w2
                pl.BlockSpec((C_H, C_H), const_map),     # w3
                pl.BlockSpec((C_OUT, C_H), const_map),   # w4
                pl.BlockSpec((C_H, 4), const_map),       # packed biases
            ],
            out_specs=pl.BlockSpec((1, C_OUT, l_tile), x_map),
        ),
        compiler_params=pltpu.CompilerParams(
            dimension_semantics=("parallel", "parallel"),
            vmem_limit_bytes=32 << 20),
    )(x_ncl, w1, w2, w3, w4, b_packed)


def init_params(key):
    """Deterministic params. Conv1d(k=1) weight (out,in,1) stored as (out,in); bias (out,1)."""
    ks = jax.random.split(key, 8)

    def mk(kw, kb, cin, cout):
        bound = 1.0 / jnp.sqrt(cin)   # PyTorch default conv init range
        w = jax.random.uniform(kw, (cout, cin), jnp.float32, -bound, bound)
        b = jax.random.uniform(kb, (cout, 1), jnp.float32, -bound, bound)
        return w, b

    w1, b1 = mk(ks[0], ks[1], C_IN, C_H)
    w2, b2 = mk(ks[2], ks[3], C_H, C_H)
    w3, b3 = mk(ks[4], ks[5], C_H, C_H)
    w4, b4 = mk(ks[6], ks[7], C_H, C_OUT)
    return (w1, b1, w2, b2, w3, b3, w4, b4)


def _ref_forward(x_ncl, params):
    """Pure-JAX reference (NCL in, NCL out)."""
    w1, b1, w2, b2, w3, b3, w4, b4 = params

    def lin(w, b, h):   # h: (N, C_in, L)
        return jnp.einsum('oi,nil->nol', w, h) + b[None, :, :]

    h = jnp.tanh(lin(w1, b1, x_ncl))
    h = jnp.tanh(lin(w2, b2, h))
    h = jnp.tanh(lin(w3, b3, h))
    logits = lin(w4, b4, h)
    return jax.nn.softmax(logits, axis=1)


if __name__ == "__main__":
    key = jax.random.PRNGKey(0)
    kx1, kx2, kx3, kx4, kp = jax.random.split(key, 5)
    params = init_params(kp)

    def check(x, msg, **kw):
        out = jax.block_until_ready(net_forward(x, params, **kw))
        ref = _ref_forward(x, params)
        assert out.shape == (x.shape[0], C_OUT, x.shape[2]), f"shape mismatch ({msg})"
        assert jnp.allclose(out, ref, atol=1e-5, rtol=1e-5), f"mismatch vs reference ({msg})"

    # Small shape consistent with the module (NCL like PyTorch).
    check(jax.random.normal(kx1, (2, C_IN, 16), jnp.float32), "small")
    # Ragged L (not a multiple of 128): exercises the masked boundary block.
    check(jax.random.normal(kx2, (3, C_IN, 1200), jnp.float32), "ragged")
    # Larger L: exercises the in-kernel lane-chunk loop (2 full chunks + tail).
    check(jax.random.normal(kx3, (2, C_IN, 5000), jnp.float32), "chunked")
    # Forced multi-block grid along L with a ragged last block.
    check(jax.random.normal(kx4, (2, C_IN, 1000), jnp.float32), "multiblock",
          l_tile_max=256)

    print("KERNEL_OK")
</pallas_src>

<mosaic_0001>
module attributes {stable_mosaic.version = 11 : i64} {
  func.func @kernel(%arg0: i32, %arg1: i32, %arg2: memref<1x5x128xf32, #tpu.memory_space<vmem>>, %arg3: memref<10x5xf32, #tpu.memory_space<vmem>>, %arg4: memref<10x10xf32, #tpu.memory_space<vmem>>, %arg5: memref<10x10xf32, #tpu.memory_space<vmem>>, %arg6: memref<2x10xf32, #tpu.memory_space<vmem>>, %arg7: memref<10x4xf32, #tpu.memory_space<vmem>>, %arg8: memref<1x2x128xf32, #tpu.memory_space<vmem>>) attributes {dimension_semantics = [#tpu.dimension_semantics<parallel>, #tpu.dimension_semantics<parallel>], iteration_bounds = array<i64: 2, 1>, scalar_prefetch = 0 : i64, scratch_operands = 0 : i64, tpu.core_type = #tpu.core_type<tc>, window_params = [{transform_indices = @transform_0, window_bounds = array<i64: 1, 5, 128>}, {pipeline_mode = #tpu.pipeline_mode<synchronous>, transform_indices = @transform_1, window_bounds = array<i64: 10, 5>}, {pipeline_mode = #tpu.pipeline_mode<synchronous>, transform_indices = @transform_2, window_bounds = array<i64: 10, 10>}, {pipeline_mode = #tpu.pipeline_mode<synchronous>, transform_indices = @transform_3, window_bounds = array<i64: 10, 10>}, {pipeline_mode = #tpu.pipeline_mode<synchronous>, transform_indices = @transform_4, window_bounds = array<i64: 2, 10>}, {pipeline_mode = #tpu.pipeline_mode<synchronous>, transform_indices = @transform_5, window_bounds = array<i64: 10, 4>}, {transform_indices = @transform_6, window_bounds = array<i64: 1, 2, 128>}]} {
    %c0 = arith.constant 0 : index
    %c0_0 = arith.constant 0 : index
    %0 = vector.load %arg3[%c0, %c0_0] : memref<10x5xf32, #tpu.memory_space<vmem>>, vector<10x5xf32>
    %c0_1 = arith.constant 0 : index
    %c0_2 = arith.constant 0 : index
    %1 = vector.load %arg4[%c0_1, %c0_2] : memref<10x10xf32, #tpu.memory_space<vmem>>, vector<10x10xf32>
    %c0_3 = arith.constant 0 : index
    %c0_4 = arith.constant 0 : index
    %2 = vector.load %arg5[%c0_3, %c0_4] : memref<10x10xf32, #tpu.memory_space<vmem>>, vector<10x10xf32>
    %c0_5 = arith.constant 0 : index
    %c0_6 = arith.constant 0 : index
    %3 = vector.load %arg6[%c0_5, %c0_6] : memref<2x10xf32, #tpu.memory_space<vmem>>, vector<2x10xf32>
    %c0_7 = arith.constant 0 : index
    %c0_8 = arith.constant 0 : index
    %4 = vector.load %arg7[%c0_7, %c0_8] : memref<10x4xf32, #tpu.memory_space<vmem>>, vector<10x1xf32>
    %c0_9 = arith.constant 0 : index
    %c1 = arith.constant 1 : index
    %5 = vector.load %arg7[%c0_9, %c1] : memref<10x4xf32, #tpu.memory_space<vmem>>, vector<10x1xf32>
    %c0_10 = arith.constant 0 : index
    %c2 = arith.constant 2 : index
    %6 = vector.load %arg7[%c0_10, %c2] : memref<10x4xf32, #tpu.memory_space<vmem>>, vector<10x1xf32>
    %c0_11 = arith.constant 0 : index
    %c3 = arith.constant 3 : index
    %7 = vector.load %arg7[%c0_11, %c3] : memref<10x4xf32, #tpu.memory_space<vmem>>, vector<2x1xf32>
    %8 = vector.shape_cast %4 : vector<10x1xf32> to vector<10x1xf32>
    %9 = vector.broadcast %8 : vector<10x1xf32> to vector<10x128xf32>
    %10 = vector.shape_cast %5 : vector<10x1xf32> to vector<10x1xf32>
    %11 = vector.broadcast %10 : vector<10x1xf32> to vector<10x128xf32>
    %12 = vector.shape_cast %6 : vector<10x1xf32> to vector<10x1xf32>
    %13 = vector.broadcast %12 : vector<10x1xf32> to vector<10x128xf32>
    %14 = vector.shape_cast %7 : vector<2x1xf32> to vector<2x1xf32>
    %15 = vector.broadcast %14 : vector<2x1xf32> to vector<2x128xf32>
    %c0_i32 = arith.constant 0 : i32
    %c128_i32 = arith.constant 128 : i32
    %16 = arith.muli %c0_i32, %c128_i32 : i32
    %17 = tpu.assume_multiple %16, 128 : i32
    %c0_12 = arith.constant 0 : index
    %c0_13 = arith.constant 0 : index
    %18 = arith.index_cast %17 : i32 to index
    %19 = vector.load %arg2[%c0_12, %c0_13, %18] : memref<1x5x128xf32, #tpu.memory_space<vmem>>, vector<1x5x128xf32>
    %20 = vector.shape_cast %19 : vector<1x5x128xf32> to vector<5x128xf32>
    %cst = arith.constant dense<0.000000e+00> : vector<10x128xf32>
    %21 = tpu.matmul %0, %20, %cst {dimension_numbers = #tpu.dot_dimension_numbers<[1], [0], [0], [1], [0, 0, 1, 1], [], []>} : vector<10x5xf32>, vector<5x128xf32>, vector<10x128xf32> -> vector<10x128xf32>
    %22 = arith.addf %21, %9 : vector<10x128xf32>
    %23 = math.tanh %22 : vector<10x128xf32>
    %cst_14 = arith.constant dense<0.000000e+00> : vector<10x128xf32>
    %24 = tpu.matmul %1, %23, %cst_14 {dimension_numbers = #tpu.dot_dimension_numbers<[1], [0], [0], [1], [0, 0, 1, 1], [], []>} : vector<10x10xf32>, vector<10x128xf32>, vector<10x128xf32> -> vector<10x128xf32>
    %25 = arith.addf %24, %11 : vector<10x128xf32>
    %26 = math.tanh %25 : vector<10x128xf32>
    %cst_15 = arith.constant dense<0.000000e+00> : vector<10x128xf32>
    %27 = tpu.matmul %2, %26, %cst_15 {dimension_numbers = #tpu.dot_dimension_numbers<[1], [0], [0], [1], [0, 0, 1, 1], [], []>} : vector<10x10xf32>, vector<10x128xf32>, vector<10x128xf32> -> vector<10x128xf32>
    %28 = arith.addf %27, %13 : vector<10x128xf32>
    %29 = math.tanh %28 : vector<10x128xf32>
    %cst_16 = arith.constant dense<0.000000e+00> : vector<2x128xf32>
    %30 = tpu.matmul %3, %29, %cst_16 {dimension_numbers = #tpu.dot_dimension_numbers<[1], [0], [0], [1], [0, 0, 1, 1], [], []>} : vector<2x10xf32>, vector<10x128xf32>, vector<2x128xf32> -> vector<2x128xf32>
    %31 = arith.addf %30, %15 : vector<2x128xf32>
    %32 = vector.extract_strided_slice %31 {offsets = [0, 0], sizes = [1, 128], strides = [1, 1]} : vector<2x128xf32> to vector<1x128xf32>
    %33 = vector.extract_strided_slice %31 {offsets = [1, 0], sizes = [1, 128], strides = [1, 1]} : vector<2x128xf32> to vector<1x128xf32>
    %34 = arith.subf %32, %33 : vector<1x128xf32>
    %35 = math.absf %34 : vector<1x128xf32>
    %cst_17 = arith.constant 0.000000e+00 : f32
    %36 = vector.broadcast %cst_17 : f32 to vector<1x128xf32>
    %37 = arith.subf %36, %35 : vector<1x128xf32>
    %38 = math.exp %37 : vector<1x128xf32>
    %cst_18 = arith.constant 1.000000e+00 : f32
    %39 = vector.broadcast %cst_18 : f32 to vector<1x128xf32>
    %40 = arith.addf %39, %38 : vector<1x128xf32>
    %cst_19 = arith.constant 1.000000e+00 : f32
    %41 = vector.broadcast %cst_19 : f32 to vector<1x128xf32>
    %42 = arith.divf %41, %40 : vector<1x128xf32>
    %cst_20 = arith.constant 0.000000e+00 : f32
    %43 = vector.broadcast %cst_20 : f32 to vector<1x128xf32>
    %44 = arith.cmpf oge, %34, %43 : vector<1x128xf32>
    %cst_21 = arith.constant 1.000000e+00 : f32
    %45 = vector.broadcast %cst_21 : f32 to vector<1x128xf32>
    %46 = arith.subf %45, %42 : vector<1x128xf32>
    %47 = arith.select %44, %42, %46 : vector<1x128xi1>, vector<1x128xf32>
    %cst_22 = arith.constant 1.000000e+00 : f32
    %48 = vector.broadcast %cst_22 : f32 to vector<1x128xf32>
    %49 = arith.subf %48, %47 : vector<1x128xf32>
    %50 = tpu.concatenate %47, %49 in 0 : vector<1x128xf32>, vector<1x128xf32> -> vector<2x128xf32>
    %c0_23 = arith.constant 0 : index
    %c0_24 = arith.constant 0 : index
    %51 = arith.index_cast %17 : i32 to index
    %52 = vector.load %arg8[%c0_23, %c0_24, %51] : memref<1x2x128xf32, #tpu.memory_space<vmem>>, vector<1x2x128xf32>
    %53 = vector.shape_cast %52 : vector<1x2x128xf32> to vector<2x128xf32>
    %54 = vector.shape_cast %50 : vector<2x128xf32> to vector<1x2x128xf32>
    tpu.vector_store %arg8[%c0_23, %c0_24, %51], %54 {strides = array<i32>} : memref<1x2x128xf32, #tpu.memory_space<vmem>>, vector<1x2x128xf32>,
    %c1_i32 = arith.constant 1 : i32
    return
  }
  func.func @transform_0(%arg0: i32, %arg1: i32) -> (i32, i32, i32) {
    %c0_i32 = arith.constant 0 : i32
    %c0_i32_0 = arith.constant 0 : i32
    return %arg0, %c0_i32, %arg1 : i32, i32, i32
  }
  func.func @transform_1(%arg0: i32, %arg1: i32) -> (i32, i32) {
    %c0_i32 = arith.constant 0 : i32
    %c0_i32_0 = arith.constant 0 : i32
    %c0_i32_1 = arith.constant 0 : i32
    return %c0_i32, %c0_i32_0 : i32, i32
  }
  func.func @transform_2(%arg0: i32, %arg1: i32) -> (i32, i32) {
    %c0_i32 = arith.constant 0 : i32
    %c0_i32_0 = arith.constant 0 : i32
    %c0_i32_1 = arith.constant 0 : i32
    return %c0_i32, %c0_i32_0 : i32, i32
  }
  func.func @transform_3(%arg0: i32, %arg1: i32) -> (i32, i32) {
    %c0_i32 = arith.constant 0 : i32
    %c0_i32_0 = arith.constant 0 : i32
    %c0_i32_1 = arith.constant 0 : i32
    return %c0_i32, %c0_i32_0 : i32, i32
  }
  func.func @transform_4(%arg0: i32, %arg1: i32) -> (i32, i32) {
    %c0_i32 = arith.constant 0 : i32
    %c0_i32_0 = arith.constant 0 : i32
    %c0_i32_1 = arith.constant 0 : i32
    return %c0_i32, %c0_i32_0 : i32, i32
  }
  func.func @transform_5(%arg0: i32, %arg1: i32) -> (i32, i32) {
    %c0_i32 = arith.constant 0 : i32
    %c0_i32_0 = arith.constant 0 : i32
    %c0_i32_1 = arith.constant 0 : i32
    return %c0_i32, %c0_i32_0 : i32, i32
  }
  func.func @transform_6(%arg0: i32, %arg1: i32) -> (i32, i32, i32) {
    %c0_i32 = arith.constant 0 : i32
    %c0_i32_0 = arith.constant 0 : i32
    return %arg0, %c0_i32, %arg1 : i32, i32, i32
  }
}

</mosaic_0001>

<llo_original>
// kernel: tpu_custom_call.1
$region0: #{tpu_custom_call.1}
  #allocation0 [shape = 'u32[]', space=smem, size = 0x4, offset = 0x4, fixed_abs, tag = 'smem constant byte address 0x4 - core index']
  #allocation1 [shape = 'u32[144,128]{1,0:T(1,128)}', space=vmem, size = 0x12000, scoped, tag = 'internal scratch']
  %s0 = inlined_call_operand.vmem [shape: f32[2,5,16], index: 0, kind: input, shape index: {}]
  %s1 = inlined_call_operand.vmem [shape: f32[10,5], index: 1, kind: input, shape index: {}]
  %s2 = inlined_call_operand.vmem [shape: f32[10,10], index: 2, kind: input, shape index: {}]
  %s3 = inlined_call_operand.vmem [shape: f32[10,10], index: 3, kind: input, shape index: {}]
  %s4 = inlined_call_operand.vmem [shape: f32[2,10], index: 4, kind: input, shape index: {}]
  %s5 = inlined_call_operand.vmem [shape: f32[10,4], index: 5, kind: input, shape index: {}]
  %s6 = inlined_call_operand.hbm [shape: f32[2,2,16], index: 6, kind: output, shape index: {}]
  %s7 = sld [smem:[#allocation0]]
  $region57: #{tpu_custom_call.1} parent=0
    _
  %s9 = ssub.s32 1, %s7
  %s10 = scalar_select 0, %s9, %s7
  $region1: #{tpu_custom_call.1} parent=0
    #allocation2 [shape = 'u8[2048]{0}', space=vmem, size = 0x800, scoped, tag = 'output window, operand 0']
    #allocation3 [shape = 's32[2]{0}', space=sflag, size = 0x8, scoped, tag = 'scoped memory for tpu_custom_call.1']
    %11 = vsyncpa [#allocation3], 0
    %s12 = scalar_lea.sflag [#allocation3], 1
    %13 = vsyncpa %s12, 0
    loop: start=0, step=1, limit=4
    $region2: #{tpu_custom_call.1} parent=1 // loop_pre_header
      _
    $region3: #{tpu_custom_call.1} parent=1 // loop_header
      %s15 = sphi 0, %s19
      %p16 = scmp.ge.s32.totalorder %s15, 4
      %s22 = sphi 0, %s34
      %s23 = sphi 0, %s30
      %s24 = sphi 0, %s22
      %s25 = sphi 0, %s23
      %s26 = sphi 0, %s24
      %s27 = sphi 0, %s25
      %s39 = sphi 0, %s41
      %s42 = sphi 0, %s39
      %s43 = sphi 0, %s42
      %s59 = sphi 0, %s43
      %s63 = sphi 0, %s63
      %s65 = sphi 0, %s63
      %s66 = sphi 0, %s65
      %s80 = sphi 0, %s66
      %s84 = sphi 0, %s84
      %s86 = sphi 0, %s84
      %s87 = sphi 0, %s86
      %s101 = sphi 0, %s87
      %s105 = sphi 0, %s105
      %s107 = sphi 0, %s105
      %s108 = sphi 0, %s107
      %s122 = sphi 0, %s108
      %s126 = sphi 0, %s126
      %s128 = sphi 0, %s126
      %s129 = sphi 0, %s128
      %s143 = sphi 0, %s129
      %s147 = sphi 0, %s147
      %s149 = sphi 0, %s147
      %s150 = sphi 0, %s149
      %s164 = sphi 0, %s150
      %s172 = sphi 0, %s174
      %s175 = sphi 0, %s172
      %s176 = sphi 0, %s175
      %s192 = sphi 0, %s176
    $region4: #{tpu_custom_call.1} parent=1 // loop_header_branch
      %18 = sbr.rel (%p16) target = $region8
    $region5: #{tpu_custom_call.1} parent=1 // loop_body
      %s20 = ssub.s32 %s15, 1
      %s21 = ssub.s32 %s15, 2
      %s28 = sadd.s32 1, %s23
      %p29 = scmp.ge.s32.totalorder %s28, 1
      %s30 = scalar_select %p29, 0, %s28
      %s31 = sadd.s32 1, %s22
      %s32 = scalar_select %p29, %s31, %s22
      %p33 = scmp.ge.s32.totalorder %s32, 2
      %s34 = scalar_select %p33, 0, %s32
      %s35 = ssub.s32 %s22, %s34
      %s36 = ssub.s32 %s23, %s30
      %s37 = sor.u32 %s35, %s36
      %p38 = scmp.eq.s32.totalorder %s37, 0
      %s40 = sadd.s32 %s39, 1
      %s41 = scalar_select %p38, %s39, %s40
      %p44 = pneg %p38
      %p45 = scmp.eq.s32.totalorder %s15, 1
      %p46 = por %p44, %p45
      %p47 = scmp.ne.s32.totalorder %s39, %s42
      %p48 = scmp.eq.s32.totalorder %s15, 0
      %p49 = por %p47, %p48
      %p50 = scmp.ne.s32.totalorder %s39, %s42
      %p51 = scmp.eq.s32.totalorder %s20, 1
      %p52 = por %p50, %p51
      %p53 = scmp.ne.s32.totalorder %s42, %s43
      %p54 = scmp.eq.s32.totalorder %s20, 0
      %p55 = por %p53, %p54
      %p56 = scmp.ne.s32.totalorder %s42, %s43
      %p57 = scmp.eq.s32.totalorder %s21, 1
      %p58 = por %p56, %p57
      %p60 = scmp.ne.s32.totalorder %s43, %s59
      %p61 = scmp.eq.s32.totalorder %s21, 0
      %p62 = por %p60, %p61
      %s64 = sadd.s32 %s63, 1
      %p67 = scmp.eq.s32.totalorder %s15, 1
      %p68 = scmp.ne.s32.totalorder %s63, %s65
      %p69 = scmp.eq.s32.totalorder %s15, 0
      %p70 = por %p68, %p69
      %p71 = scmp.ne.s32.totalorder %s63, %s65
      %p72 = scmp.eq.s32.totalorder %s20, 1
      %p73 = por %p71, %p72
      %p74 = scmp.ne.s32.totalorder %s65, %s66
      %p75 = scmp.eq.s32.totalorder %s20, 0
      %p76 = por %p74, %p75
      %p77 = scmp.ne.s32.totalorder %s65, %s66
      %p78 = scmp.eq.s32.totalorder %s21, 1
      %p79 = por %p77, %p78
      %p81 = scmp.ne.s32.totalorder %s66, %s80
      %p82 = scmp.eq.s32.totalorder %s21, 0
      %p83 = por %p81, %p82
      %s85 = sadd.s32 %s84, 1
      %p88 = scmp.eq.s32.totalorder %s15, 1
      %p89 = scmp.ne.s32.totalorder %s84, %s86
      %p90 = scmp.eq.s32.totalorder %s15, 0
      %p91 = por %p89, %p90
      %p92 = scmp.ne.s32.totalorder %s84, %s86
      %p93 = scmp.eq.s32.totalorder %s20, 1
      %p94 = por %p92, %p93
      %p95 = scmp.ne.s32.totalorder %s86, %s87
      %p96 = scmp.eq.s32.totalorder %s20, 0
      %p97 = por %p95, %p96
      %p98 = scmp.ne.s32.totalorder %s86, %s87
      %p99 = scmp.eq.s32.totalorder %s21, 1
      %p100 = por %p98, %p99
      %p102 = scmp.ne.s32.totalorder %s87, %s101
      %p103 = scmp.eq.s32.totalorder %s21, 0
      %p104 = por %p102, %p103
      %s106 = sadd.s32 %s105, 1
      %p109 = scmp.eq.s32.totalorder %s15, 1
      %p110 = scmp.ne.s32.totalorder %s105, %s107
      %p111 = scmp.eq.s32.totalorder %s15, 0
      %p112 = por %p110, %p111
      %p113 = scmp.ne.s32.totalorder %s105, %s107
      %p114 = scmp.eq.s32.totalorder %s20, 1
      %p115 = por %p113, %p114
      %p116 = scmp.ne.s32.totalorder %s107, %s108
      %p117 = scmp.eq.s32.totalorder %s20, 0
      %p118 = por %p116, %p117
      %p119 = scmp.ne.s32.totalorder %s107, %s108
      %p120 = scmp.eq.s32.totalorder %s21, 1
      %p121 = por %p119, %p120
      %p123 = scmp.ne.s32.totalorder %s108, %s122
      %p124 = scmp.eq.s32.totalorder %s21, 0
      %p125 = por %p123, %p124
      %s127 = sadd.s32 %s126, 1
      %p130 = scmp.eq.s32.totalorder %s15, 1
      %p131 = scmp.ne.s32.totalorder %s126, %s128
      %p132 = scmp.eq.s32.totalorder %s15, 0
      %p133 = por %p131, %p132
      %p134 = scmp.ne.s32.totalorder %s126, %s128
      %p135 = scmp.eq.s32.totalorder %s20, 1
      %p136 = por %p134, %p135
      %p137 = scmp.ne.s32.totalorder %s128, %s129
      %p138 = scmp.eq.s32.totalorder %s20, 0
      %p139 = por %p137, %p138
      %p140 = scmp.ne.s32.totalorder %s128, %s129
      %p141 = scmp.eq.s32.totalorder %s21, 1
      %p142 = por %p140, %p141
      %p144 = scmp.ne.s32.totalorder %s129, %s143
      %p145 = scmp.eq.s32.totalorder %s21, 0
      %p146 = por %p144, %p145
      %s148 = sadd.s32 %s147, 1
      %p151 = scmp.eq.s32.totalorder %s15, 1
      %p152 = scmp.ne.s32.totalorder %s147, %s149
      %p153 = scmp.eq.s32.totalorder %s15, 0
      %p154 = por %p152, %p153
      %p155 = scmp.ne.s32.totalorder %s147, %s149
      %p156 = scmp.eq.s32.totalorder %s20, 1
      %p157 = por %p155, %p156
      %p158 = scmp.ne.s32.totalorder %s149, %s150
      %p159 = scmp.eq.s32.totalorder %s20, 0
      %p160 = por %p158, %p159
      %p161 = scmp.ne.s32.totalorder %s149, %s150
      %p162 = scmp.eq.s32.totalorder %s21, 1
      %p163 = por %p161, %p162
      %p165 = scmp.ne.s32.totalorder %s150, %s164
      %p166 = scmp.eq.s32.totalorder %s21, 0
      %p167 = por %p165, %p166
      %s168 = ssub.s32 %s22, %s34
      %s169 = ssub.s32 %s23, %s30
      %s170 = sor.u32 %s168, %s169
      %p171 = scmp.eq.s32.totalorder %s170, 0
      %s173 = sadd.s32 %s172, 1
      %s174 = scalar_select %p171, %s172, %s173
      %p177 = pneg %p171
      %p178 = scmp.eq.s32.totalorder %s15, 1
      %p179 = por %p177, %p178
      %p180 = scmp.ne.s32.totalorder %s172, %s175
      %p181 = scmp.eq.s32.totalorder %s15, 0
      %p182 = por %p180, %p181
      %p183 = scmp.ne.s32.totalorder %s172, %s175
      %p184 = scmp.eq.s32.totalorder %s20, 1
      %p185 = por %p183, %p184
      %p186 = scmp.ne.s32.totalorder %s175, %s176
      %p187 = scmp.eq.s32.totalorder %s20, 0
      %p188 = por %p186, %p187
      %p189 = scmp.ne.s32.totalorder %s175, %s176
      %p190 = scmp.eq.s32.totalorder %s21, 1
      %p191 = por %p189, %p190
      %p193 = scmp.ne.s32.totalorder %s176, %s192
      %p194 = scmp.eq.s32.totalorder %s21, 0
      %p195 = por %p193, %p194
      %p196 = scmp.le.s32.totalorder 1, %s15
      %p197 = scmp.lt.s32.totalorder %s15, 3
      %p198 = pnand %p196, %p197
      %p199 = pneg %p198
      // Predicated region
      $region9: #{tpu_custom_call.1} parent=5 // pred_check
        _
      $region10: #{tpu_custom_call.1} parent=5 // pred_check_branch
        %201 = sbr.rel (%p198) target = $region12
      $region11: #{tpu_custom_call.1} parent=5 // pred_region
        %s202 = ssub.s32 %s15, 1
        // Predicated region
        $region13: #{tpu_custom_call.1} parent=11 // pred_check
          %p203 = pneg %p76
        $region14: #{tpu_custom_call.1} parent=11 // pred_check_branch
          %205 = sbr.rel (%p203) target = $region16
        $region15: #{tpu_custom_call.1} parent=11 // pred_region
          _
        $region16: #{tpu_custom_call.1} parent=11 // pred_fallthru
          _
        // Predicated region
        $region17: #{tpu_custom_call.1} parent=11 // pred_check
          %p206 = pneg %p97
        $region18: #{tpu_custom_call.1} parent=11 // pred_check_branch
          %208 = sbr.rel (%p206) target = $region20
        $region19: #{tpu_custom_call.1} parent=11 // pred_region
          _
        $region20: #{tpu_custom_call.1} parent=11 // pred_fallthru
          _
        // Predicated region
        $region21: #{tpu_custom_call.1} parent=11 // pred_check
          %p209 = pneg %p118
        $region22: #{tpu_custom_call.1} parent=11 // pred_check_branch
          %211 = sbr.rel (%p209) target = $region24
        $region23: #{tpu_custom_call.1} parent=11 // pred_region
          _
        $region24: #{tpu_custom_call.1} parent=11 // pred_fallthru
          _
        // Predicated region
        $region25: #{tpu_custom_call.1} parent=11 // pred_check
          %p212 = pneg %p139
        $region26: #{tpu_custom_call.1} parent=11 // pred_check_branch
          %214 = sbr.rel (%p212) target = $region28
        $region27: #{tpu_custom_call.1} parent=11 // pred_region
          _
        $region28: #{tpu_custom_call.1} parent=11 // pred_fallthru
          _
        // Predicated region
        $region29: #{tpu_custom_call.1} parent=11 // pred_check
          %p215 = pneg %p160
        $region30: #{tpu_custom_call.1} parent=11 // pred_check_branch
          %217 = sbr.rel (%p215) target = $region32
        $region31: #{tpu_custom_call.1} parent=11 // pred_region
          _
        $region32: #{tpu_custom_call.1} parent=11 // pred_fallthru
          _
      $region12: #{tpu_custom_call.1} parent=5 // pred_fallthru
        _
      %p218 = scmp.lt.s32.totalorder %s15, 2
      // Predicated region
      $region33: #{tpu_custom_call.1} parent=5 // pred_check
        %p219 = pneg %p218
      $region34: #{tpu_custom_call.1} parent=5 // pred_check_branch
        %221 = sbr.rel (%p219) target = $region36
      $region35: #{tpu_custom_call.1} parent=5 // pred_region
        // Predicated region
        $region37: #{tpu_custom_call.1} parent=35 // pred_check
          %p222 = pneg %p49
        $region38: #{tpu_custom_call.1} parent=35 // pred_check_branch
          %224 = sbr.rel (%p222) target = $region40
        $region39: #{tpu_custom_call.1} parent=35 // pred_region
          %p225 = scmp.lt.s32.totalorder %s22, 1
          %s226 = scalar_select %p225, %s22, 1
          %p227 = scmp.lt.s32.totalorder %s23, 0
          %s228 = scalar_select %p227, %s23, 0
          %s229 = sadd.s32 %s228, %s226
          %s230 = smul.addr %s229, 8
          %s231 = scalar_lea.vmem %s0, %s230
        $region40: #{tpu_custom_call.1} parent=35 // pred_fallthru
          _
      $region36: #{tpu_custom_call.1} parent=5 // pred_fallthru
        _
      %p232 = scmp.le.s32.totalorder 1, %s15
      %p233 = scmp.lt.s32.totalorder %s15, 3
      %p234 = pnand %p232, %p233
      %p235 = pneg %p234
      // Predicated region
      $region41: #{tpu_custom_call.1} parent=5 // pred_check
        _
      $region42: #{tpu_custom_call.1} parent=5 // pred_check_branch
        %237 = sbr.rel (%p234) target = $region44
      $region43: #{tpu_custom_call.1} parent=5 // pred_region
        %s238 = ssub.s32 %s15, 1
        %p239 = scmp.lt.s32.totalorder %s24, 1
        %s240 = scalar_select %p239, %s24, 1
        %p241 = scmp.lt.s32.totalorder %s25, 0
        %s242 = scalar_select %p241, %s25, 0
        %s243 = sadd.s32 %s242, %s240
        %s244 = smul.addr %s243, 8
        %s245 = scalar_lea.vmem %s0, %s244
        %p246 = pneg %p55
        %p247 = pneg %p52
        %p248 = pneg %p76
        %p249 = pneg %p73
        %p250 = pneg %p97
        %p251 = pneg %p94
        %p252 = pneg %p118
        %p253 = pneg %p115
        %p254 = pneg %p139
        %p255 = pneg %p136
        %p256 = pneg %p160
        %p257 = pneg %p157
        %p258 = pneg %p188
        %p259 = pneg %p185
        %s260 = sand.u32 %s175, 1
        %s261 = scalar_lea.sflag [#allocation3], %s260
        %s262 = sand.u32 %s175, 1
        %s263 = smul.addr %s262, 2
        %s264 = scalar_lea.vmem [#allocation2], %s263
        %p265 = scmp.lt.s32.totalorder %s24, 1
        %s266 = scalar_select %p265, %s24, 1
        %p267 = scmp.lt.s32.totalorder %s25, 0
        %s268 = scalar_select %p267, %s25, 0
        %s269 = sadd.s32 %s268, %s266
        %s270 = smul.addr %s269, 8
        %s271 = scalar_lea.vmem %s0, %s270
        %v272 = vld [vmem:[%s1] sm:$0xff]
        %v273 = vld [vmem:[%s1 + $0x8] sm:$0x3]
        %v274 = vld [vmem:[%s2] sm:$0xff]
        %v275 = vld [vmem:[%s2 + $0x8] sm:$0x3]
        %v276 = vld [vmem:[%s3] sm:$0xff]
        %v277 = vld [vmem:[%s3 + $0x8] sm:$0x3]
        %v278 = vld [vmem:[%s4] sm:$0x3]
        %v279 = vld [vmem:[%s5] sm:$0xff]
        %v280 = vld [vmem:[%s5 + $0x8] sm:$0x3]
        %v281 = vld [vmem:[%s5] sm:$0x3]
        %283 = vset.pattern.permute.xlu0 0
        %284 = vperm.xlu0 %283, %v279
        %v285 = vpop.permute.xlu0 %284
        %288 = vset.pattern.permute.xlu0 0
        %289 = vperm.xlu0 %288, %v280
        %v290 = vpop.permute.xlu0 %289
        %292 = vset.pattern.permute.xlu0 1
        %293 = vperm.xlu0 %292, %v279
        %v294 = vpop.permute.xlu0 %293
        %296 = vset.pattern.permute.xlu0 1
        %297 = vperm.xlu0 %296, %v280
        %v298 = vpop.permute.xlu0 %297
        %300 = vset.pattern.permute.xlu0 2
        %301 = vperm.xlu0 %300, %v279
        %v302 = vpop.permute.xlu0 %301
        %304 = vset.pattern.permute.xlu0 2
        %305 = vperm.xlu0 %304, %v280
        %v306 = vpop.permute.xlu0 %305
        %309 = vset.pattern.permute.xlu0 3
        %310 = vperm.xlu0 %309, %v281
        %v311 = vpop.permute.xlu0 %310
        %v313 = vld [vmem:[%s271] sm:$0x1f]
        %vm314 = vcmask 39936
        %v316 = vsel %vm314, %v272, 0
        %v319 = vsel %vm314, %v273, 0
        %vm321 = vcmask 1044480
        %v323 = vsel %vm321, %v313, 0
        %325 = vmatprep.subr.mxu0 0.0
        %326 = vmatpush1.msra.mxu0 %v323
        %327 = vmatprep.subr.mxu0 0.0
        %328 = vmatpush1.msra.mxu0 0.0
        %329 = vmatprep.subr.mxu0 0.0
        %330 = vmatpush1.msra.mxu0 0.0
        %331 = vmatprep.subr.mxu0 0.0
        %332 = vmatpush1.msra.mxu0 0.0
        %333 = vmatprep.subr.mxu0 0.0
        %334 = vmatpush1.msra.mxu0 0.0
        %335 = vmatprep.subr.mxu0 0.0
        %336 = vmatpush1.msra.mxu0 0.0
        %337 = vmatprep.subr.mxu0 0.0
        %338 = vmatpush1.msra.mxu0 0.0
        %339 = vmatprep.subr.mxu0 0.0
        %340 = vmatpush1.msra.mxu0 0.0
        %341 = vmatprep.subr.mxu0 0.0
        %342 = vmatpush1.msra.mxu0 0.0
        %343 = vmatprep.subr.mxu0 0.0
        %344 = vmatpush1.msra.mxu0 0.0
        %345 = vmatprep.subr.mxu0 0.0
        %346 = vmatpush1.msra.mxu0 0.0
        %347 = vmatprep.subr.mxu0 0.0
        %348 = vmatpush1.msra.mxu0 0.0
        %349 = vmatprep.subr.mxu0 0.0
        %350 = vmatpush1.msra.mxu0 0.0
        %351 = vmatprep.subr.mxu0 0.0
        %352 = vmatpush1.msra.mxu0 0.0
        %353 = vmatprep.subr.mxu0 0.0
        %354 = vmatpush1.msra.mxu0 0.0
        %355 = vmatprep.subr.mxu0 0.0
        %356 = vmatpush1.msra.mxu0 0.0
        %357 = vmatprep.subr.mxu0 0.0
        %358 = vmatpush1.msra.mxu0 0.0
        %359 = vmatprep.subr.mxu0 0.0
        %360 = vmatpush1.msra.mxu0 0.0
        %361 = vmatprep.subr.mxu0 0.0
        %362 = vmatpush1.msra.mxu0 0.0
        %363 = vmatprep.subr.mxu0 0.0
        %364 = vmatpush1.msra.mxu0 0.0
        %365 = vmatprep.subr.mxu0 0.0
        %366 = vmatpush1.msra.mxu0 0.0
        %367 = vmatprep.subr.mxu0 0.0
        %368 = vmatpush1.msra.mxu0 0.0
        %369 = vmatprep.subr.mxu0 0.0
        %370 = vmatpush1.msra.mxu0 0.0
        %371 = vmatprep.subr.mxu0 0.0
        %372 = vmatpush1.msra.mxu0 0.0
        %373 = vmatprep.subr.mxu0 0.0
        %374 = vmatpush1.msra.mxu0 0.0
        %375 = vmatprep.subr.mxu0 0.0
        %376 = vmatpush1.msra.mxu0 0.0
        %377 = vmatprep.subr.mxu0 0.0
        %378 = vmatpush1.msra.mxu0 0.0
        %379 = vmatprep.subr.mxu0 0.0
        %380 = vmatpush1.msra.mxu0 0.0
        %381 = vmatprep.subr.mxu0 0.0
        %382 = vmatpush1.msra.mxu0 0.0
        %383 = vmatprep.subr.mxu0 0.0
        %384 = vmatpush1.msra.mxu0 0.0
        %385 = vmatprep.subr.mxu0 0.0
        %386 = vmatpush1.msra.mxu0 0.0
        %387 = vmatprep.subr.mxu0 0.0
        %388 = vmatpush1.msra.mxu0 0.0
        %389 = vmatprep.mubr.f32.mxu0 0.0
        %390 = vmatmul.mubr.f32.gmra.mrb[0].mxu0 %v316
        %v391 = vpop.f32.mrb[0].mxu0
        %v392 = vadd.f32 %v285, %v391
        %v393 = vpop.f32.mrb[0].mxu0
        %394 = vmatprep.mubr.f32.mxu0 0.0
        %395 = vmatmul.mubr.f32.gmra.mrb[0].mxu0 %v319
        %v396 = vpop.f32.mrb[0].mxu0
        %v397 = vadd.f32 %v290, %v396
        %v398 = vpop.f32.mrb[0].mxu0
        %399 = vdwg.mxu0
        %v400 = vtanh.pop %v392
        %v401 = vtanh.pop %v397
        %vm402 = vcmask 80896
        %v404 = vsel %vm402, %v274, 0
        %v407 = vsel %vm402, %v275, 0
        %vm409 = vcmask 1041408
        %v411 = vsel %vm409, %v401, 0
        %413 = vmatprep.subr.mxu0 0.0
        %414 = vmatpush1.msra.mxu0 %v400
        %415 = vmatprep.subr.mxu0 0.0
        %416 = vmatpush1.msra.mxu0 %v411
        %417 = vmatprep.subr.mxu0 0.0
        %418 = vmatpush1.msra.mxu0 0.0
        %419 = vmatprep.subr.mxu0 0.0
        %420 = vmatpush1.msra.mxu0 0.0
        %421 = vmatprep.subr.mxu0 0.0
        %422 = vmatpush1.msra.mxu0 0.0
        %423 = vmatprep.subr.mxu0 0.0
        %424 = vmatpush1.msra.mxu0 0.0
        %425 = vmatprep.subr.mxu0 0.0
        %426 = vmatpush1.msra.mxu0 0.0
        %427 = vmatprep.subr.mxu0 0.0
        %428 = vmatpush1.msra.mxu0 0.0
        %429 = vmatprep.subr.mxu0 0.0
        %430 = vmatpush1.msra.mxu0 0.0
        %431 = vmatprep.subr.mxu0 0.0
        %432 = vmatpush1.msra.mxu0 0.0
        %433 = vmatprep.subr.mxu0 0.0
        %434 = vmatpush1.msra.mxu0 0.0
        %435 = vmatprep.subr.mxu0 0.0
        %436 = vmatpush1.msra.mxu0 0.0
        %437 = vmatprep.subr.mxu0 0.0
        %438 = vmatpush1.msra.mxu0 0.0
        %439 = vmatprep.subr.mxu0 0.0
        %440 = vmatpush1.msra.mxu0 0.0
        %441 = vmatprep.subr.mxu0 0.0
        %442 = vmatpush1.msra.mxu0 0.0
        %443 = vmatprep.subr.mxu0 0.0
        %444 = vmatpush1.msra.mxu0 0.0
        %445 = vmatprep.subr.mxu0 0.0
        %446 = vmatpush1.msra.mxu0 0.0
        %447 = vmatprep.subr.mxu0 0.0
        %448 = vmatpush1.msra.mxu0 0.0
        %449 = vmatprep.subr.mxu0 0.0
        %450 = vmatpush1.msra.mxu0 0.0
        %451 = vmatprep.subr.mxu0 0.0
        %452 = vmatpush1.msra.mxu0 0.0
        %453 = vmatprep.subr.mxu0 0.0
        %454 = vmatpush1.msra.mxu0 0.0
        %455 = vmatprep.subr.mxu0 0.0
        %456 = vmatpush1.msra.mxu0 0.0
        %457 = vmatprep.subr.mxu0 0.0
        %458 = vmatpush1.msra.mxu0 0.0
        %459 = vmatprep.subr.mxu0 0.0
        %460 = vmatpush1.msra.mxu0 0.0
        %461 = vmatprep.subr.mxu0 0.0
        %462 = vmatpush1.msra.mxu0 0.0
        %463 = vmatprep.subr.mxu0 0.0
        %464 = vmatpush1.msra.mxu0 0.0
        %465 = vmatprep.subr.mxu0 0.0
        %466 = vmatpush1.msra.mxu0 0.0
        %467 = vmatprep.subr.mxu0 0.0
        %468 = vmatpush1.msra.mxu0 0.0
        %469 = vmatprep.subr.mxu0 0.0
        %470 = vmatpush1.msra.mxu0 0.0
        %471 = vmatprep.subr.mxu0 0.0
        %472 = vmatpush1.msra.mxu0 0.0
        %473 = vmatprep.subr.mxu0 0.0
        %474 = vmatpush1.msra.mxu0 0.0
        %475 = vmatprep.subr.mxu0 0.0
        %476 = vmatpush1.msra.mxu0 0.0
        %477 = vmatprep.mubr.f32.mxu0 0.0
        %478 = vmatmul.mubr.f32.gmra.mrb[0].mxu0 %v404
        %v479 = vpop.f32.mrb[0].mxu0
        %v480 = vadd.f32 %v294, %v479
        %v481 = vpop.f32.mrb[0].mxu0
        %482 = vmatprep.mubr.f32.mxu0 0.0
        %483 = vmatmul.mubr.f32.gmra.mrb[0].mxu0 %v407
        %v484 = vpop.f32.mrb[0].mxu0
        %v485 = vadd.f32 %v298, %v484
        %v486 = vpop.f32.mrb[0].mxu0
        %487 = vdwg.mxu0
        %v488 = vtanh.pop %v480
        %v489 = vtanh.pop %v485
        %v491 = vsel %vm402, %v276, 0
        %v494 = vsel %vm402, %v277, 0
        %v497 = vsel %vm409, %v489, 0
        %499 = vmatprep.subr.mxu0 0.0
        %500 = vmatpush1.msra.mxu0 %v488
        %501 = vmatprep.subr.mxu0 0.0
        %502 = vmatpush1.msra.mxu0 %v497
        %503 = vmatprep.subr.mxu0 0.0
        %504 = vmatpush1.msra.mxu0 0.0
        %505 = vmatprep.subr.mxu0 0.0
        %506 = vmatpush1.msra.mxu0 0.0
        %507 = vmatprep.subr.mxu0 0.0
        %508 = vmatpush1.msra.mxu0 0.0
        %509 = vmatprep.subr.mxu0 0.0
        %510 = vmatpush1.msra.mxu0 0.0
        %511 = vmatprep.subr.mxu0 0.0
        %512 = vmatpush1.msra.mxu0 0.0
        %513 = vmatprep.subr.mxu0 0.0
        %514 = vmatpush1.msra.mxu0 0.0
        %515 = vmatprep.subr.mxu0 0.0
        %516 = vmatpush1.msra.mxu0 0.0
        %517 = vmatprep.subr.mxu0 0.0
        %518 = vmatpush1.msra.mxu0 0.0
        %519 = vmatprep.subr.mxu0 0.0
        %520 = vmatpush1.msra.mxu0 0.0
        %521 = vmatprep.subr.mxu0 0.0
        %522 = vmatpush1.msra.mxu0 0.0
        %523 = vmatprep.subr.mxu0 0.0
        %524 = vmatpush1.msra.mxu0 0.0
        %525 = vmatprep.subr.mxu0 0.0
        %526 = vmatpush1.msra.mxu0 0.0
        %527 = vmatprep.subr.mxu0 0.0
        %528 = vmatpush1.msra.mxu0 0.0
        %529 = vmatprep.subr.mxu0 0.0
        %530 = vmatpush1.msra.mxu0 0.0
        %531 = vmatprep.subr.mxu0 0.0
        %532 = vmatpush1.msra.mxu0 0.0
        %533 = vmatprep.subr.mxu0 0.0
        %534 = vmatpush1.msra.mxu0 0.0
        %535 = vmatprep.subr.mxu0 0.0
        %536 = vmatpush1.msra.mxu0 0.0
        %537 = vmatprep.subr.mxu0 0.0
        %538 = vmatpush1.msra.mxu0 0.0
        %539 = vmatprep.subr.mxu0 0.0
        %540 = vmatpush1.msra.mxu0 0.0
        %541 = vmatprep.subr.mxu0 0.0
        %542 = vmatpush1.msra.mxu0 0.0
        %543 = vmatprep.subr.mxu0 0.0
        %544 = vmatpush1.msra.mxu0 0.0
        %545 = vmatprep.subr.mxu0 0.0
        %546 = vmatpush1.msra.mxu0 0.0
        %547 = vmatprep.subr.mxu0 0.0
        %548 = vmatpush1.msra.mxu0 0.0
        %549 = vmatprep.subr.mxu0 0.0
        %550 = vmatpush1.msra.mxu0 0.0
        %551 = vmatprep.subr.mxu0 0.0
        %552 = vmatpush1.msra.mxu0 0.0
        %553 = vmatprep.subr.mxu0 0.0
        %554 = vmatpush1.msra.mxu0 0.0
        %555 = vmatprep.subr.mxu0 0.0
        %556 = vmatpush1.msra.mxu0 0.0
        %557 = vmatprep.subr.mxu0 0.0
        %558 = vmatpush1.msra.mxu0 0.0
        %559 = vmatprep.subr.mxu0 0.0
        %560 = vmatpush1.msra.mxu0 0.0
        %561 = vmatprep.subr.mxu0 0.0
        %562 = vmatpush1.msra.mxu0 0.0
        %563 = vmatprep.mubr.f32.mxu0 0.0
        %564 = vmatmul.mubr.f32.gmra.mrb[0].mxu0 %v491
        %v565 = vpop.f32.mrb[0].mxu0
        %v566 = vadd.f32 %v302, %v565
        %v567 = vpop.f32.mrb[0].mxu0
        %568 = vmatprep.mubr.f32.mxu0 0.0
        %569 = vmatmul.mubr.f32.gmra.mrb[0].mxu0 %v494
        %v570 = vpop.f32.mrb[0].mxu0
        %v571 = vadd.f32 %v306, %v570
        %v572 = vpop.f32.mrb[0].mxu0
        %573 = vdwg.mxu0
        %v574 = vtanh.pop %v566
        %v575 = vtanh.pop %v571
        %v577 = vsel %vm402, %v278, 0
        %v580 = vsel %vm409, %v575, 0
        %582 = vmatprep.subr.mxu0 0.0
        %583 = vmatpush1.msra.mxu0 %v574
        %584 = vmatprep.subr.mxu0 0.0
        %585 = vmatpush1.msra.mxu0 %v580
        %586 = vmatprep.subr.mxu0 0.0
        %587 = vmatpush1.msra.mxu0 0.0
        %588 = vmatprep.subr.mxu0 0.0
        %589 = vmatpush1.msra.mxu0 0.0
        %590 = vmatprep.subr.mxu0 0.0
        %591 = vmatpush1.msra.mxu0 0.0
        %592 = vmatprep.subr.mxu0 0.0
        %593 = vmatpush1.msra.mxu0 0.0
        %594 = vmatprep.subr.mxu0 0.0
        %595 = vmatpush1.msra.mxu0 0.0
        %596 = vmatprep.subr.mxu0 0.0
        %597 = vmatpush1.msra.mxu0 0.0
        %598 = vmatprep.subr.mxu0 0.0
        %599 = vmatpush1.msra.mxu0 0.0
        %600 = vmatprep.subr.mxu0 0.0
        %601 = vmatpush1.msra.mxu0 0.0
        %602 = vmatprep.subr.mxu0 0.0
        %603 = vmatpush1.msra.mxu0 0.0
        %604 = vmatprep.subr.mxu0 0.0
        %605 = vmatpush1.msra.mxu0 0.0
        %606 = vmatprep.subr.mxu0 0.0
        %607 = vmatpush1.msra.mxu0 0.0
        %608 = vmatprep.subr.mxu0 0.0
        %609 = vmatpush1.msra.mxu0 0.0
        %610 = vmatprep.subr.mxu0 0.0
        %611 = vmatpush1.msra.mxu0 0.0
        %612 = vmatprep.subr.mxu0 0.0
        %613 = vmatpush1.msra.mxu0 0.0
        %614 = vmatprep.subr.mxu0 0.0
        %615 = vmatpush1.msra.mxu0 0.0
        %616 = vmatprep.subr.mxu0 0.0
        %617 = vmatpush1.msra.mxu0 0.0
        %618 = vmatprep.subr.mxu0 0.0
        %619 = vmatpush1.msra.mxu0 0.0
        %620 = vmatprep.subr.mxu0 0.0
        %621 = vmatpush1.msra.mxu0 0.0
        %622 = vmatprep.subr.mxu0 0.0
        %623 = vmatpush1.msra.mxu0 0.0
        %624 = vmatprep.subr.mxu0 0.0
        %625 = vmatpush1.msra.mxu0 0.0
        %626 = vmatprep.subr.mxu0 0.0
        %627 = vmatpush1.msra.mxu0 0.0
        %628 = vmatprep.subr.mxu0 0.0
        %629 = vmatpush1.msra.mxu0 0.0
        %630 = vmatprep.subr.mxu0 0.0
        %631 = vmatpush1.msra.mxu0 0.0
        %632 = vmatprep.subr.mxu0 0.0
        %633 = vmatpush1.msra.mxu0 0.0
        %634 = vmatprep.subr.mxu0 0.0
        %635 = vmatpush1.msra.mxu0 0.0
        %636 = vmatprep.subr.mxu0 0.0
        %637 = vmatpush1.msra.mxu0 0.0
        %638 = vmatprep.subr.mxu0 0.0
        %639 = vmatpush1.msra.mxu0 0.0
        %640 = vmatprep.subr.mxu0 0.0
        %641 = vmatpush1.msra.mxu0 0.0
        %642 = vmatprep.subr.mxu0 0.0
        %643 = vmatpush1.msra.mxu0 0.0
        %644 = vmatprep.subr.mxu0 0.0
        %645 = vmatpush1.msra.mxu0 0.0
        %646 = vmatprep.mubr.f32.mxu0 0.0
        %647 = vmatmul.mubr.f32.gmra.mrb[0].mxu0 %v577
        %v648 = vpop.f32.mrb[0].mxu0
        %v649 = vadd.f32 %v311, %v648
        %v650 = vpop.f32.mrb[0].mxu0
        %651 = vdwg.mxu0
        %v653 = vrot.slane %v649, 1
        %v655 = vsub.f32 %v649, %v653
        %v656 = vand.u32 2147483647, %v655
        %v657 = vsub.f32 0.0, %v656
        %v658 = vmul.f32 %v657, 1.442695
        %v659 = vpow.pop %v658
        %v660 = vadd.f32 %v659, 1.0
        %v661 = vrcp.pop %v660
        %v662 = vmul.f32 1.0, %v661
        %vm663 = vcmp.ge.f32.partialorder %v655, 0.0
        %v664 = vsub.f32 1.0, %v662
        %v665 = vsel %vm663, %v662, %v664
        %v666 = vsub.f32 1.0, %v665
        %v668 = vrot.slane %v666, 7
        %vm670 = vcmask 1040384
        %v671 = vsel %vm670, %v665, %v668
        %672 = vst [vmem:[%s264] sm:$0x3] %v671
        %s673 = sand.u32 %s175, 1
        %s674 = scalar_lea.sflag [#allocation3], %s673
        %s675 = sand.u32 %s175, 1
        %s676 = smul.addr %s675, 2
        %s677 = scalar_lea.vmem [#allocation2], %s676
        // Predicated region
        $region45: #{tpu_custom_call.1} parent=43 // pred_check
          %p678 = pneg %p185
        $region46: #{tpu_custom_call.1} parent=43 // pred_check_branch
          %680 = sbr.rel (%p678) target = $region48
        $region47: #{tpu_custom_call.1} parent=43 // pred_region
          %s682 = ssub.s32 32, 32
          %683 = vsyncadd %s674, %s682
          %s684 = sadd.s32 %s25, %s24
          %s685 = smul.addr %s684, 32
          %s686 = scalar_lea.hbm %s6, %s685
          %s688 = sshll.u32 %s677, 4
          %s689 = int_to_ptr.vmem [resolvable:$true] %s688
          %691 = dma.vmem_to_hbm [thread:$0]  %s689, 32, %s686, %s674
        $region48: #{tpu_custom_call.1} parent=43 // pred_fallthru
          _
      $region44: #{tpu_custom_call.1} parent=5 // pred_fallthru
        _
      %p692 = scmp.le.s32.totalorder 2, %s15
      // Predicated region
      $region49: #{tpu_custom_call.1} parent=5 // pred_check
        %p693 = pneg %p692
      $region50: #{tpu_custom_call.1} parent=5 // pred_check_branch
        %695 = sbr.rel (%p693) target = $region52
      $region51: #{tpu_custom_call.1} parent=5 // pred_region
        %s696 = ssub.s32 %s15, 2
        // Predicated region
        $region53: #{tpu_custom_call.1} parent=51 // pred_check
          %p697 = pneg %p191
        $region54: #{tpu_custom_call.1} parent=51 // pred_check_branch
          %699 = sbr.rel (%p697) target = $region56
        $region55: #{tpu_custom_call.1} parent=51 // pred_region
          %s700 = sand.u32 %s176, 1
          %s701 = scalar_lea.sflag [#allocation3], %s700
          %s702 = sand.u32 %s176, 1
          %s703 = smul.addr %s702, 2
          %s704 = scalar_lea.vmem [#allocation2], %s703
          %705 = dma.done %s701, 32
        $region56: #{tpu_custom_call.1} parent=51 // pred_fallthru
          _
      $region52: #{tpu_custom_call.1} parent=5 // pred_fallthru
        _
    $region6: #{tpu_custom_call.1} parent=1 // loop_footer
      %s19 = sadd.s32 1, %s15
    $region7: #{tpu_custom_call.1} parent=1 // loop_footer_branch
      %14 = sbr.rel target = $region3
    $region8: #{tpu_custom_call.1} parent=1 // loop_exit
      _
    %706 = vsyncpa [#allocation3], 1
    %s707 = scalar_lea.sflag [#allocation3], 1
    %708 = vsyncpa %s707, 1

</llo_original>
